<compile_context>
chip_gen: v5e
topology: v5e:2x2
jax: 0.10.0
libtpu: 0.0.40
codegen_flags: <defaults>
</compile_context>

<pallas_src>
from functools import partial

import jax
import jax.numpy as jnp
from jax.experimental import pallas as pl
from jax.experimental.pallas import tpu as pltpu


def _distill_kl_kernel(ys_ref, yt_ref, out_ref, acc_ref, *,
                       n_rows, temp, blocks_per_core):
    p = pl.program_id(0)            # partial-sum axis ("parallel": v7x 2 TCs)
    i = pl.program_id(1)            # per-partial block axis ("arbitrary")
    tm = ys_ref.shape[0]

    @pl.when(i == 0)
    def _init():
        acc_ref[...] = jnp.zeros_like(acc_ref)

    inv_t = jnp.float32(1.0 / temp)
    ys = ys_ref[...].astype(jnp.float32) * inv_t      # [tm, C]
    yt = yt_ref[...].astype(jnp.float32) * inv_t      # [tm, C]

    # Zero rows past the logical batch (ragged tail of the last real block and
    # clamp-duplicated blocks of the 2-way split) BEFORE any exp/log so
    # garbage / duplicated data cannot propagate.  Zero logits give
    # log_p_t == log_p_s -> exactly 0 KL; masked again on row_kl for safety.
    global_block = p * blocks_per_core + i
    row = global_block * tm + jax.lax.broadcasted_iota(jnp.int32, (tm, 1), 0)
    valid = row < n_rows
    ys = jnp.where(valid, ys, 0.0)
    yt = jnp.where(valid, yt, 0.0)

    # Student log-softmax (numerically stable).
    ys_sh = ys - jnp.max(ys, axis=-1, keepdims=True)
    log_p_s = ys_sh - jnp.log(jnp.sum(jnp.exp(ys_sh), axis=-1, keepdims=True))

    # Teacher side, algebraically folded (no per-element divide, no p_t tile):
    #   KL_row = sum_c p_t * (log p_t - log p_s)
    #          = (sum_c exp_t * (yt_sh - log_p_s)) / sum_t - log(sum_t)
    yt_sh = yt - jnp.max(yt, axis=-1, keepdims=True)
    exp_t = jnp.exp(yt_sh)
    sum_t = jnp.sum(exp_t, axis=-1, keepdims=True)
    num = jnp.sum(exp_t * (yt_sh - log_p_s), axis=-1, keepdims=True)
    row_kl = num / sum_t - jnp.log(sum_t)             # [tm, 1]

    # Loop-carried dependency is a pure VPU vector add into VMEM scratch.
    acc_ref[...] += jnp.where(valid, row_kl, 0.0)

    @pl.when(i == pl.num_programs(1) - 1)
    def _finalize():
        # Single cross-sublane reduce per partial; lane-dense (8,128) store.
        out_ref[...] = jnp.full(out_ref.shape, jnp.sum(acc_ref[...]),
                                dtype=jnp.float32)


def _vmem_capacity_bytes():
    try:
        return int(pltpu.get_tpu_info().vmem_capacity_bytes)
    except Exception:
        return 128 * 1024 * 1024   # v5e/v6e default if query unavailable


def distill_kl_loss(y_s, y_t, temperature=4.0, block_rows=None):
    """Pallas DistillKL forward. y_s, y_t: [N, C] logits (f32 or bf16)."""
    assert y_s.shape == y_t.shape and y_s.ndim == 2
    n, c = y_s.shape
    assert n > 0, "DistillKL needs at least one row"

    # Generation-aware VMEM budget: ~48 MiB on v7x (64 MiB physical),
    # ~96 MiB on v5e/v6e (128 MiB physical).
    vmem_budget = (_vmem_capacity_bytes() * 3) // 4

    # Per-operand tile target (~4 MiB) sized so ~12 live tile-sized buffers
    # (2 inputs x 2 pipeline buffers + softmax/KL temporaries) fit the budget.
    # VMEM sizing uses the lane-padded class width.
    c_pad = ((c + 127) // 128) * 128
    tile_target = min(4 << 20, vmem_budget // 12)
    if block_rows is None:
        block_rows = (tile_target // (c_pad * 4)) // 8 * 8
        block_rows = max(8, min(block_rows, 4096))
    tm = min(int(block_rows), n)
    if tm < n:
        tm = max(8, (tm // 8) * 8)

    total_blocks = int(pl.cdiv(n, tm))
    # 2-way partial split feeds both TensorCores on v7x; on 1-TC chips the
    # "parallel" axis simply runs sequentially at no extra cost.
    num_partials = int(min(2, total_blocks))
    blocks_per_core = int(pl.cdiv(total_blocks, num_partials))

    vmem_limit = int(min(vmem_budget,
                         max(32 << 20, 14 * tm * c_pad * 4 + (2 << 20))))

    def in_map(p, i):
        # Clamp the duplicated tail blocks of the 2-way split; the kernel
        # masks their rows so they contribute exactly 0.
        return (jnp.minimum(p * blocks_per_core + i, total_blocks - 1), 0)

    kernel = partial(_distill_kl_kernel, n_rows=n, temp=float(temperature),
                     blocks_per_core=blocks_per_core)

    # TODO(synk): for vocab-scale C (>=128K) add a C-tiled online-softmax
    # variant; a whole-row block at that width would not fit v7x's 64 MiB VMEM.
    partials = pl.pallas_call(
        kernel,
        out_shape=jax.ShapeDtypeStruct((num_partials, 8, 128), jnp.float32),
        grid=(num_partials, blocks_per_core),
        in_specs=[
            pl.BlockSpec((tm, c), in_map),
            pl.BlockSpec((tm, c), in_map),
        ],
        out_specs=pl.BlockSpec((1, 8, 128), lambda p, i: (p, 0, 0)),
        scratch_shapes=[pltpu.VMEM((tm, 1), jnp.float32)],
        compiler_params=pltpu.CompilerParams(
            dimension_semantics=("parallel", "arbitrary"),
            vmem_limit_bytes=vmem_limit),
    )(y_s, y_t)

    kl_sum = jnp.sum(partials[:, 0, 0])
    return kl_sum * jnp.float32(temperature * temperature) / jnp.float32(n)


def _distill_kl_ref(y_s, y_t, temperature):
    """Pure-JAX reference mirroring the PyTorch module."""
    log_p_s = jax.nn.log_softmax(y_s / temperature, axis=1)
    p_t = jax.nn.softmax(y_t / temperature, axis=1)
    kl_sum = jnp.sum(p_t * (jnp.log(p_t) - log_p_s))
    return kl_sum * (temperature ** 2) / y_s.shape[0]


if __name__ == "__main__":
    key = jax.random.PRNGKey(0)
    k1, k2, k3, k4, k5, k6 = jax.random.split(key, 6)
    T = 4.0

    # Case 1: small batch of logits, single block, single partial.
    N1, C1 = 8, 32
    y_s1 = jax.random.normal(k1, (N1, C1), dtype=jnp.float32) * 3.0
    y_t1 = jax.random.normal(k2, (N1, C1), dtype=jnp.float32) * 3.0
    loss1 = distill_kl_loss(y_s1, y_t1, temperature=T)
    jax.block_until_ready(loss1)
    ref1 = _distill_kl_ref(y_s1, y_t1, T)
    assert jnp.abs(loss1 - ref1) <= 1e-3 * jnp.maximum(1.0, jnp.abs(ref1)), (
        f"mismatch: {loss1} vs {ref1}")

    # Case 2: ragged batch, multi-block grid + 2-way partial split with a
    # clamped / fully-masked duplicate tail block.
    N2, C2 = 20, 32
    y_s2 = jax.random.normal(k3, (N2, C2), dtype=jnp.float32) * 3.0
    y_t2 = jax.random.normal(k4, (N2, C2), dtype=jnp.float32) * 3.0
    loss2 = distill_kl_loss(y_s2, y_t2, temperature=T, block_rows=8)
    jax.block_until_ready(loss2)
    ref2 = _distill_kl_ref(y_s2, y_t2, T)
    assert jnp.abs(loss2 - ref2) <= 1e-3 * jnp.maximum(1.0, jnp.abs(ref2)), (
        f"mismatch: {loss2} vs {ref2}")

    # Case 3: bf16 logits (halved HBM traffic), even 2-way split, no clamping.
    N3, C3 = 32, 32
    y_s3 = (jax.random.normal(k5, (N3, C3), dtype=jnp.float32) * 3.0
            ).astype(jnp.bfloat16)
    y_t3 = (jax.random.normal(k6, (N3, C3), dtype=jnp.float32) * 3.0
            ).astype(jnp.bfloat16)
    loss3 = distill_kl_loss(y_s3, y_t3, temperature=T, block_rows=16)
    jax.block_until_ready(loss3)
    ref3 = _distill_kl_ref(y_s3.astype(jnp.float32),
                           y_t3.astype(jnp.float32), T)
    assert jnp.abs(loss3 - ref3) <= 1e-3 * jnp.maximum(1.0, jnp.abs(ref3)), (
        f"mismatch: {loss3} vs {ref3}")

    print("KERNEL_OK")
</pallas_src>

<mosaic_0001>
module attributes {stable_mosaic.version = 11 : i64} {
  func.func @_distill_kl_kernel(%arg0: i32, %arg1: i32, %arg2: memref<8x32xf32, #tpu.memory_space<vmem>>, %arg3: memref<8x32xf32, #tpu.memory_space<vmem>>, %arg4: memref<1x8x128xf32, #tpu.memory_space<vmem>>, %arg5: memref<8x1xf32, #tpu.memory_space<vmem>>) attributes {dimension_semantics = [#tpu.dimension_semantics<parallel>, #tpu.dimension_semantics<arbitrary>], iteration_bounds = array<i64: 1, 1>, scalar_prefetch = 0 : i64, scratch_operands = 1 : i64, tpu.core_type = #tpu.core_type<tc>, window_params = [{transform_indices = @transform_0, window_bounds = array<i64: 8, 32>}, {transform_indices = @transform_1, window_bounds = array<i64: 8, 32>}, {transform_indices = @transform_2, window_bounds = array<i64: 1, 8, 128>}]} {
    %c0_i32 = arith.constant 0 : i32
    %0 = arith.cmpi eq, %arg1, %c0_i32 : i32
    %1 = arith.extui %0 : i1 to i32
    %c0_i32_0 = arith.constant 0 : i32
    %2 = arith.cmpi ne, %1, %c0_i32_0 : i32
    scf.if %2 {
      %cst_20 = arith.constant 0.000000e+00 : f32
      %57 = vector.broadcast %cst_20 : f32 to vector<8x1xf32>
      %c0_21 = arith.constant 0 : index
      %c0_22 = arith.constant 0 : index
      %58 = vector.load %arg5[%c0_21, %c0_22] : memref<8x1xf32, #tpu.memory_space<vmem>>, vector<8x1xf32>
      tpu.vector_store %arg5[%c0_21, %c0_22], %57 {strides = array<i32>} : memref<8x1xf32, #tpu.memory_space<vmem>>, vector<8x1xf32>,
    } else {
    }
    %c0 = arith.constant 0 : index
    %c0_1 = arith.constant 0 : index
    %3 = vector.load %arg2[%c0, %c0_1] : memref<8x32xf32, #tpu.memory_space<vmem>>, vector<8x32xf32>
    %cst = arith.constant 2.500000e-01 : f32
    %4 = vector.broadcast %cst : f32 to vector<8x32xf32>
    %5 = arith.mulf %3, %4 : vector<8x32xf32>
    %c0_2 = arith.constant 0 : index
    %c0_3 = arith.constant 0 : index
    %6 = vector.load %arg3[%c0_2, %c0_3] : memref<8x32xf32, #tpu.memory_space<vmem>>, vector<8x32xf32>
    %cst_4 = arith.constant 2.500000e-01 : f32
    %7 = vector.broadcast %cst_4 : f32 to vector<8x32xf32>
    %8 = arith.mulf %6, %7 : vector<8x32xf32>
    %c1_i32 = arith.constant 1 : i32
    %9 = arith.muli %arg0, %c1_i32 : i32
    %10 = arith.addi %9, %arg1 : i32
    %c8_i32 = arith.constant 8 : i32
    %11 = arith.muli %10, %c8_i32 : i32
    %12 = tpu.iota {dimensions = array<i32: 0>} : vector<8x1xi32>
    %13 = vector.broadcast %11 : i32 to vector<8x1xi32>
    %14 = arith.addi %13, %12 : vector<8x1xi32>
    %c8_i32_5 = arith.constant 8 : i32
    %15 = vector.broadcast %c8_i32_5 : i32 to vector<8x1xi32>
    %16 = arith.cmpi slt, %14, %15 : vector<8x1xi32>
    %cst_6 = arith.constant 0.000000e+00 : f32
    %17 = vector.shape_cast %16 : vector<8x1xi1> to vector<8x1xi1>
    %18 = vector.broadcast %17 : vector<8x1xi1> to vector<8x32xi1>
    %19 = vector.broadcast %cst_6 : f32 to vector<8x32xf32>
    %20 = arith.select %18, %5, %19 : vector<8x32xi1>, vector<8x32xf32>
    %cst_7 = arith.constant 0.000000e+00 : f32
    %21 = vector.shape_cast %16 : vector<8x1xi1> to vector<8x1xi1>
    %22 = vector.broadcast %21 : vector<8x1xi1> to vector<8x32xi1>
    %23 = vector.broadcast %cst_7 : f32 to vector<8x32xf32>
    %24 = arith.select %22, %8, %23 : vector<8x32xi1>, vector<8x32xf32>
    %cst_8 = arith.constant dense<0xFF800000> : vector<8xf32>
    %25 = vector.multi_reduction <maximumf>, %20, %cst_8 [1] : vector<8x32xf32> to vector<8xf32>
    %26 = vector.shape_cast %25 : vector<8xf32> to vector<8x1xf32>
    %27 = vector.broadcast %26 : vector<8x1xf32> to vector<8x32xf32>
    %28 = arith.subf %20, %27 : vector<8x32xf32>
    %29 = math.exp %28 : vector<8x32xf32>
    %cst_9 = arith.constant dense<0.000000e+00> : vector<8xf32>
    %30 = vector.multi_reduction <add>, %29, %cst_9 [1] : vector<8x32xf32> to vector<8xf32>
    %31 = vector.shape_cast %30 : vector<8xf32> to vector<8x1xf32>
    %32 = math.log %31 : vector<8x1xf32>
    %33 = vector.broadcast %32 : vector<8x1xf32> to vector<8x32xf32>
    %34 = arith.subf %28, %33 : vector<8x32xf32>
    %cst_10 = arith.constant dense<0xFF800000> : vector<8xf32>
    %35 = vector.multi_reduction <maximumf>, %24, %cst_10 [1] : vector<8x32xf32> to vector<8xf32>
    %36 = vector.shape_cast %35 : vector<8xf32> to vector<8x1xf32>
    %37 = vector.broadcast %36 : vector<8x1xf32> to vector<8x32xf32>
    %38 = arith.subf %24, %37 : vector<8x32xf32>
    %39 = math.exp %38 : vector<8x32xf32>
    %cst_11 = arith.constant dense<0.000000e+00> : vector<8xf32>
    %40 = vector.multi_reduction <add>, %39, %cst_11 [1] : vector<8x32xf32> to vector<8xf32>
    %41 = vector.shape_cast %40 : vector<8xf32> to vector<8x1xf32>
    %42 = arith.subf %38, %34 : vector<8x32xf32>
    %43 = arith.mulf %39, %42 : vector<8x32xf32>
    %cst_12 = arith.constant dense<0.000000e+00> : vector<8xf32>
    %44 = vector.multi_reduction <add>, %43, %cst_12 [1] : vector<8x32xf32> to vector<8xf32>
    %45 = vector.shape_cast %44 : vector<8xf32> to vector<8x1xf32>
    %46 = arith.divf %45, %41 : vector<8x1xf32>
    %47 = math.log %41 : vector<8x1xf32>
    %48 = arith.subf %46, %47 : vector<8x1xf32>
    %c0_13 = arith.constant 0 : index
    %c0_14 = arith.constant 0 : index
    %49 = vector.load %arg5[%c0_13, %c0_14] : memref<8x1xf32, #tpu.memory_space<vmem>>, vector<8x1xf32>
    %cst_15 = arith.constant 0.000000e+00 : f32
    %50 = vector.broadcast %cst_15 : f32 to vector<8x1xf32>
    %51 = arith.select %16, %48, %50 : vector<8x1xi1>, vector<8x1xf32>
    %52 = arith.addf %49, %51 : vector<8x1xf32>
    %c0_16 = arith.constant 0 : index
    %c0_17 = arith.constant 0 : index
    %53 = vector.load %arg5[%c0_16, %c0_17] : memref<8x1xf32, #tpu.memory_space<vmem>>, vector<8x1xf32>
    tpu.vector_store %arg5[%c0_16, %c0_17], %52 {strides = array<i32>} : memref<8x1xf32, #tpu.memory_space<vmem>>, vector<8x1xf32>,
    %c0_i32_18 = arith.constant 0 : i32
    %54 = arith.cmpi eq, %arg1, %c0_i32_18 : i32
    %55 = arith.extui %54 : i1 to i32
    %c0_i32_19 = arith.constant 0 : i32
    %56 = arith.cmpi ne, %55, %c0_i32_19 : i32
    scf.if %56 {
      %c0_20 = arith.constant 0 : index
      %c0_21 = arith.constant 0 : index
      %57 = vector.load %arg5[%c0_20, %c0_21] : memref<8x1xf32, #tpu.memory_space<vmem>>, vector<8x1xf32>
      %58 = vector.shape_cast %57 : vector<8x1xf32> to vector<1x8x1xf32>
      %cst_22 = arith.constant dense<0.000000e+00> : vector<1xf32>
      %59 = vector.multi_reduction <add>, %58, %cst_22 [1, 2] : vector<1x8x1xf32> to vector<1xf32>
      %60 = vector.shape_cast %59 : vector<1xf32> to vector<1x1x1xf32>
      %61 = vector.extract %60[0, 0, 0] : f32 from vector<1x1x1xf32>
      %62 = vector.broadcast %61 : f32 to vector<1x8x128xf32>
      %c0_23 = arith.constant 0 : index
      %c0_24 = arith.constant 0 : index
      %c0_25 = arith.constant 0 : index
      %63 = vector.load %arg4[%c0_23, %c0_24, %c0_25] : memref<1x8x128xf32, #tpu.memory_space<vmem>>, vector<1x8x128xf32>
      tpu.vector_store %arg4[%c0_23, %c0_24, %c0_25], %62 {strides = array<i32>} : memref<1x8x128xf32, #tpu.memory_space<vmem>>, vector<1x8x128xf32>,
    } else {
    }
    return
  }
  func.func @transform_0(%arg0: i32, %arg1: i32) -> (i32, i32) {
    %c1_i32 = arith.constant 1 : i32
    %0 = arith.muli %arg0, %c1_i32 : i32
    %1 = arith.addi %0, %arg1 : i32
    %c0_i32 = arith.constant 0 : i32
    %2 = arith.minsi %1, %c0_i32 : i32
    %c0_i32_0 = arith.constant 0 : i32
    %c0_i32_1 = arith.constant 0 : i32
    return %2, %c0_i32_0 : i32, i32
  }
  func.func @transform_1(%arg0: i32, %arg1: i32) -> (i32, i32) {
    %c1_i32 = arith.constant 1 : i32
    %0 = arith.muli %arg0, %c1_i32 : i32
    %1 = arith.addi %0, %arg1 : i32
    %c0_i32 = arith.constant 0 : i32
    %2 = arith.minsi %1, %c0_i32 : i32
    %c0_i32_0 = arith.constant 0 : i32
    %c0_i32_1 = arith.constant 0 : i32
    return %2, %c0_i32_0 : i32, i32
  }
  func.func @transform_2(%arg0: i32, %arg1: i32) -> (i32, i32, i32) {
    %c0_i32 = arith.constant 0 : i32
    %c0_i32_0 = arith.constant 0 : i32
    %c0_i32_1 = arith.constant 0 : i32
    return %arg0, %c0_i32, %c0_i32_0 : i32, i32, i32
  }
}

</mosaic_0001>

<llo_original>
// kernel: tpu_custom_call.1
$region0: #{tpu_custom_call.1}
  #allocation0 [shape = 'u32[]', space=smem, size = 0x4, offset = 0x4, fixed_abs, tag = 'smem constant byte address 0x4 - core index']
  #allocation1 [shape = 'u32[72,128]{1,0:T(1,128)}', space=vmem, size = 0x9000, scoped, tag = 'internal scratch']
  #allocation2 [shape = 'f32[8,1]{1,0:T(8,128)}', space=vmem, size = 0x1000, scoped, tag = 'scratch operand']
  %s0 = inlined_call_operand.hbm [shape: f32[8,32], index: 0, kind: input, shape index: {}]
  %s1 = inlined_call_operand.hbm [shape: f32[8,32], index: 1, kind: input, shape index: {}]
  %s2 = inlined_call_operand.hbm [shape: f32[1,8,128], index: 2, kind: output, shape index: {}]
  %s3 = sld [smem:[#allocation0]]
  $region34: #{tpu_custom_call.1} parent=0
    _
  %s5 = ssub.s32 1, %s3
  %s6 = scalar_select 0, %s5, %s3
  $region1: #{tpu_custom_call.1} parent=0
    #allocation3 [shape = 'u8[4096]{0}', space=vmem, size = 0x1000, scoped, tag = 'input window, operand 0, single buffered']
    #allocation4 [shape = 's32[1]{0}', space=sflag, size = 0x4, scoped, tag = 'scoped memory for tpu_custom_call.1']
    #allocation5 [shape = 's32[1]{0}', space=sflag, size = 0x4, scoped, tag = 'scoped memory for tpu_custom_call.1']
    #allocation6 [shape = 'u8[4096]{0}', space=vmem, size = 0x1000, scoped, tag = 'input window, operand 1, single buffered']
    #allocation7 [shape = 's32[1]{0}', space=sflag, size = 0x4, scoped, tag = 'scoped memory for tpu_custom_call.1']
    #allocation8 [shape = 'u8[4096]{0}', space=vmem, size = 0x1000, scoped, tag = 'output window, operand 0, single buffered']
    %7 = vsyncpa [#allocation4], 0
    %8 = vsyncpa [#allocation7], 0
    %9 = vsyncpa [#allocation5], 0
    // Predicated region
    $region2: #{tpu_custom_call.1} parent=1 // pred_check
      _
    $region3: #{tpu_custom_call.1} parent=1 // pred_check_branch
      %11 = sbr.rel (0) target = $region5
    $region4: #{tpu_custom_call.1} parent=1 // pred_region
      %s12 = sadd.s32 0, 0
      %p13 = scmp.lt.s32.totalorder %s12, 0
      %s14 = scalar_select %p13, %s12, 0
      %16 = vsyncadd [#allocation4], 0
      %s17 = smul.addr %s14, 8
      %s18 = scalar_lea.hbm %s0, %s17
      %s20 = sshll.u32 %s18, 4
      %s21 = int_to_ptr.hbm [resolvable:$true] %s20
      %s22 = sshll.u32 [#allocation3], 4
      %s23 = int_to_ptr.vmem [resolvable:$true] %s22
      %25 = dma.hbm_to_vmem [thread:$0]  %s21, 128, %s23, [#allocation4]
    $region5: #{tpu_custom_call.1} parent=1 // pred_fallthru
      _
    // Predicated region
    $region6: #{tpu_custom_call.1} parent=1 // pred_check
      _
    $region7: #{tpu_custom_call.1} parent=1 // pred_check_branch
      %27 = sbr.rel (0) target = $region9
    $region8: #{tpu_custom_call.1} parent=1 // pred_region
      %s28 = sadd.s32 0, 0
      %p29 = scmp.lt.s32.totalorder %s28, 0
      %s30 = scalar_select %p29, %s28, 0
      %32 = vsyncadd [#allocation7], 0
      %s33 = smul.addr %s30, 8
      %s34 = scalar_lea.hbm %s1, %s33
      %s36 = sshll.u32 %s34, 4
      %s37 = int_to_ptr.hbm [resolvable:$true] %s36
      %s38 = sshll.u32 [#allocation6], 4
      %s39 = int_to_ptr.vmem [resolvable:$true] %s38
      %41 = dma.hbm_to_vmem [thread:$0]  %s37, 128, %s39, [#allocation7]
    $region9: #{tpu_custom_call.1} parent=1 // pred_fallthru
      _
    // Predicated region
    $region10: #{tpu_custom_call.1} parent=1 // pred_check
      _
    $region11: #{tpu_custom_call.1} parent=1 // pred_check_branch
      %43 = sbr.rel (0) target = $region13
    $region12: #{tpu_custom_call.1} parent=1 // pred_region
      %45 = dma.done [#allocation4], 128
    $region13: #{tpu_custom_call.1} parent=1 // pred_fallthru
      _
    // Predicated region
    $region14: #{tpu_custom_call.1} parent=1 // pred_check
      _
    $region15: #{tpu_custom_call.1} parent=1 // pred_check_branch
      %47 = sbr.rel (0) target = $region17
    $region16: #{tpu_custom_call.1} parent=1 // pred_region
      %49 = dma.done [#allocation7], 128
    $region17: #{tpu_custom_call.1} parent=1 // pred_fallthru
      _
    %s50 = sadd.s32 0, 0
    %p51 = scmp.lt.s32.totalorder %s50, 0
    %s52 = scalar_select %p51, %s50, 0
    %s53 = sadd.s32 0, 0
    %p54 = scmp.lt.s32.totalorder %s53, 0
    %s55 = scalar_select %p54, %s53, 0
    %p56 = scmp.eq.s32.totalorder 0, 0
    // Predicated region
    $region18: #{tpu_custom_call.1} parent=1 // pred_check
      %p57 = pneg %p56
    $region19: #{tpu_custom_call.1} parent=1 // pred_check_branch
      %59 = sbr.rel (%p57) target = $region21
    $region20: #{tpu_custom_call.1} parent=1 // pred_region
      %vm60 = vcmask 7168
      %61 = vst.msk [vmem:[#allocation2] sm:$0xff] %vm60, 0.0
    $region21: #{tpu_custom_call.1} parent=1 // pred_fallthru
      _
    %v62 = vld [vmem:[#allocation3] sm:$0xff]
    %v63 = vmul.f32 %v62, 0.25
    %v64 = vld [vmem:[#allocation6] sm:$0xff]
    %v65 = vmul.f32 %v64, 0.25
    %s66 = sadd.s32 0, 0
    %s67 = smul.u32 %s66, 8
    %v68 = vlaneseq
    %v69 = vshrl.u32 %v68, 7
    %v70 = vstv %s67
    %v71 = vadd.s32 %v70, %v69
    %vm72 = vcmp.lt.s32.totalorder %v71, 8
    %v73 = vsel %vm72, 1, 0
    %vm74 = vcmp.eq.s32.totalorder %v73, 1
    %v75 = vsel %vm74, %v63, 0.0
    %v76 = vsel %vm74, %v65, 0.0
    %vm77 = vcmask 261120
    %v78 = vsel %vm77, %v75, -inf
    %79 = vmax.xlane.f32.xlu0 %v78
    %v80 = vpop.xlane.xlu0 %79
    %v81 = vsub.f32 %v75, %v80
    %v82 = vmul.f32 %v81, 1.442695
    %v83 = vpow.pop %v82
    %v84 = vsel %vm77, %v83, 0.0
    %85 = vadd.xlane.f32.xlu0 %v84
    %v86 = vpop.xlane.xlu0 %85
    %v87 = vlog2.pop %v86
    %v88 = vmul.f32 %v87, 0.6931472
    %v89 = vsub.f32 %v81, %v88
    %v90 = vsel %vm77, %v76, -inf
    %91 = vmax.xlane.f32.xlu0 %v90
    %v92 = vpop.xlane.xlu0 %91
    %v93 = vsub.f32 %v76, %v92
    %v94 = vmul.f32 %v93, 1.442695
    %v95 = vpow.pop %v94
    %v96 = vsel %vm77, %v95, 0.0
    %97 = vadd.xlane.f32.xlu0 %v96
    %v98 = vpop.xlane.xlu0 %97
    %v99 = vsub.f32 %v93, %v89
    %v100 = vmul.f32 %v95, %v99
    %v101 = vsel %vm77, %v100, 0.0
    %102 = vadd.xlane.f32.xlu0 %v101
    %v103 = vpop.xlane.xlu0 %102
    %v104 = vrcp.pop %v98
    %v105 = vmul.f32 %v98, %v104
    %v106 = vsub.f32 1.0, %v105
    %v107 = vmul.f32 %v104, %v106
    %v108 = vadd.f32 %v104, %v107
    %vm109 = vweird.f32 %v98
    %vm110 = vweird.f32 %v104
    %vm111 = vmor %vm109, %vm110
    %v112 = vsel %vm111, %v104, %v108
    %v113 = vand.u32 2147483647, %v98
    %vm114 = vcmp.eq.f32.partialorder %v113, 8.507059e+37
    %v115 = vand.u32 %v98, 2147483648
    %v116 = vor.u32 1.1754944e-38, %v115
    %v117 = vsel %vm114, %v116, %v112
    %v118 = vmul.f32 %v103, %v117
    %v119 = vlog2.pop %v98
    %v120 = vmul.f32 %v119, 0.6931472
    %v121 = vsub.f32 %v118, %v120
    %v122 = vld [vmem:[#allocation2] sm:$0xff]
    %v123 = vsel %vm72, %v121, 0.0
    %v124 = vadd.f32 %v122, %v123
    %vm125 = vcmask 7168
    %126 = vst.msk [vmem:[#allocation2] sm:$0xff] %vm125, %v124
    // Predicated region
    $region22: #{tpu_custom_call.1} parent=1 // pred_check
      %p127 = pneg %p56
    $region23: #{tpu_custom_call.1} parent=1 // pred_check_branch
      %129 = sbr.rel (%p127) target = $region25
    $region24: #{tpu_custom_call.1} parent=1 // pred_region
      %v130 = vld [vmem:[#allocation2] sm:$0xff]
      %v131 = vsel %vm125, %v130, 0.0
      %132 = vadd.xlane.f32.xlu0 %v131
      %v133 = vpop.xlane.xlu0 %132
      %v134 = vrot.slane %v133, 4
      %v135 = vadd.f32 %v133, %v134
      %v136 = vrot.slane %v135, 2
      %v137 = vadd.f32 %v135, %v136
      %v138 = vrot.slane %v137, 1
      %v139 = vadd.f32 %v137, %v138
      %s140 = vtos %v139
      %v141 = vstv %s140
      %142 = vst [vmem:[#allocation8] sm:$0xff] %v141
    $region25: #{tpu_custom_call.1} parent=1 // pred_fallthru
      _
    // Predicated region
    $region26: #{tpu_custom_call.1} parent=1 // pred_check
      _
    $region27: #{tpu_custom_call.1} parent=1 // pred_check_branch
      %144 = sbr.rel (0) target = $region29
    $region28: #{tpu_custom_call.1} parent=1 // pred_region
      %146 = vsyncadd [#allocation5], 0
      %s148 = sshll.u32 [#allocation8], 4
      %s149 = int_to_ptr.vmem [resolvable:$true] %s148
      %s150 = sshll.u32 %s2, 4
      %s151 = int_to_ptr.hbm [resolvable:$true] %s150
      %153 = dma.vmem_to_hbm [thread:$0]  %s149, 128, %s151, [#allocation5]
    $region29: #{tpu_custom_call.1} parent=1 // pred_fallthru
      _
    // Predicated region
    $region30: #{tpu_custom_call.1} parent=1 // pred_check
      _
    $region31: #{tpu_custom_call.1} parent=1 // pred_check_branch
      %155 = sbr.rel (0) target = $region33
    $region32: #{tpu_custom_call.1} parent=1 // pred_region
      %157 = dma.done [#allocation5], 128
    $region33: #{tpu_custom_call.1} parent=1 // pred_fallthru
      _
    %158 = vsyncpa [#allocation4], 1
    %159 = vsyncpa [#allocation7], 1
    %160 = vsyncpa [#allocation5], 1

</llo_original>
